<compile_context>
chip_gen: v5e
topology: v5e:2x2
jax: 0.10.0
libtpu: 0.0.40
codegen_flags: <defaults>
</compile_context>

<pallas_src>
import functools
import math

import jax
import jax.numpy as jnp
from jax.experimental import pallas as pl
from jax.experimental.pallas import tpu as pltpu

BN_EPS = 1e-3
ACT_DTYPE = jnp.bfloat16      # inter-layer activation storage dtype
W_DTYPE = jnp.bfloat16        # matmul weight storage dtype
TM_MAX = 512                  # row tile for the pointwise-conv matmuls
_VMEM_LIMIT = 48 * 1024 * 1024

# EfficientNet-B0 block configuration:
# (expand_ratio, kernel, stride, in_ch, out_ch, num_layers)
B0_CFG = [
    (1, 3, 1, 32, 16, 1),
    (6, 3, 2, 16, 24, 2),
    (6, 5, 2, 24, 40, 2),
    (6, 3, 2, 40, 80, 3),
    (6, 5, 1, 80, 112, 3),
    (6, 5, 2, 112, 192, 4),
    (6, 3, 1, 192, 320, 1),
]


def _full_spec(shape):
    nd = len(shape)
    return pl.BlockSpec(shape, lambda i, _nd=nd: (0,) * _nd)


def _cparams(sem):
    return pltpu.CompilerParams(dimension_semantics=sem,
                                vmem_limit_bytes=_VMEM_LIMIT)


# ------------------------------ Pallas kernels ------------------------------

def _mm_affine_kernel(*refs, act, has_gate, has_res):
    """Y = (gate * X) @ W, folded-BN affine, optional SiLU, optional residual add."""
    it = iter(refs)
    x_ref = next(it)
    g_ref = next(it) if has_gate else None
    w_ref = next(it)
    s_ref = next(it)
    b_ref = next(it)
    r_ref = next(it) if has_res else None
    o_ref = next(it)

    x = x_ref[0]                                             # (TM, Cin)
    if has_gate:
        x = (x.astype(jnp.float32) * g_ref[0]).astype(w_ref.dtype)
    y = jnp.dot(x, w_ref[...], preferred_element_type=jnp.float32)
    y = y * s_ref[...] + b_ref[...]
    if act == "silu":
        y = y * jax.nn.sigmoid(y)
    if has_res:
        y = y + r_ref[0].astype(jnp.float32)
    o_ref[0] = y.astype(o_ref.dtype)


def _dw_kernel(*refs, taps, num_planes, act, inv_hw):
    """Depthwise conv (strided output via phase planes) + folded-BN + SiLU,
    plus fused global-average-pool epilogue (SE squeeze)."""
    plane_refs = refs[:num_planes]
    w_ref, s_ref, b_ref, o_ref, p_ref = refs[num_planes:]
    _, ho, wo, c = o_ref.shape

    w = w_ref[...]                                            # (kh, kw, c) f32
    planes = [pr[0] for pr in plane_refs]                     # (hs, ws, c) bf16
    acc = jnp.zeros((ho, wo, c), jnp.float32)
    for (i, j, pi, a, b) in taps:
        acc = acc + (planes[pi][a:a + ho, b:b + wo, :].astype(jnp.float32)
                     * w[i, j:j + 1, :])
    y = acc * s_ref[...] + b_ref[...]
    if act == "silu":
        y = y * jax.nn.sigmoid(y)
    o_ref[0] = y.astype(o_ref.dtype)
    # SE squeeze: per-channel mean over spatial dims of the activated output.
    ps = jnp.sum(y, axis=0)                                   # (wo, c)
    ps = jnp.sum(ps, axis=0, keepdims=True)                   # (1, c)
    p_ref[0] = (ps * inv_hw).astype(p_ref.dtype)


def _se_fc_kernel(p_ref, w1_ref, b1_ref, w2_ref, b2_ref, g_ref):
    """Squeeze-Excitation FCs: pooled -> fc1 -> SiLU -> fc2 -> sigmoid gate."""
    p = p_ref[...]                                            # (N, 1, Cexp)
    s = p[:, 0, :]                                            # (N, Cexp)
    h = jnp.dot(s, w1_ref[...], preferred_element_type=jnp.float32) + b1_ref[...]
    h = h * jax.nn.sigmoid(h)
    g = jax.nn.sigmoid(
        jnp.dot(h, w2_ref[...], preferred_element_type=jnp.float32) + b2_ref[...])
    g_ref[...] = g.reshape(g_ref.shape)


def _head_pool_fc_kernel(x_ref, w_ref, s_ref, b_ref, fcw_ref, fcb_ref, o_ref, *, inv_hw):
    """Head 1x1 conv + folded BN + SiLU + global avg pool + linear classifier."""
    x = x_ref[0]                                              # (HW, 320)
    y = jnp.dot(x, w_ref[...], preferred_element_type=jnp.float32)
    y = y * s_ref[...] + b_ref[...]
    y = y * jax.nn.sigmoid(y)
    pooled = jnp.sum(y, axis=0, keepdims=True) * inv_hw       # (1, 1280) f32
    logits = jnp.dot(pooled, fcw_ref[...],
                     preferred_element_type=jnp.float32) + fcb_ref[...]
    o_ref[0] = logits.astype(o_ref.dtype)


# ------------------------------ kernel wrappers ------------------------------

def _matmul_affine3(x3, w, scale, bias, act, gate=None, residual=None,
                    out_dtype=ACT_DTYPE):
    n, m, cin = x3.shape
    cout = w.shape[1]
    tm = m if m <= TM_MAX else TM_MAX
    grid = (n, pl.cdiv(m, tm))

    args = [x3]
    in_specs = [pl.BlockSpec((1, tm, cin), lambda b, mi: (b, mi, 0))]
    if gate is not None:
        args.append(gate)
        in_specs.append(pl.BlockSpec((1, 1, cin), lambda b, mi: (b, 0, 0)))
    args.extend([w, scale.reshape(1, cout), bias.reshape(1, cout)])
    in_specs.extend([
        pl.BlockSpec((cin, cout), lambda b, mi: (0, 0)),
        pl.BlockSpec((1, cout), lambda b, mi: (0, 0)),
        pl.BlockSpec((1, cout), lambda b, mi: (0, 0)),
    ])
    if residual is not None:
        args.append(residual)
        in_specs.append(pl.BlockSpec((1, tm, cout), lambda b, mi: (b, mi, 0)))

    return pl.pallas_call(
        functools.partial(_mm_affine_kernel, act=act,
                          has_gate=gate is not None, has_res=residual is not None),
        out_shape=jax.ShapeDtypeStruct((n, m, cout), out_dtype),
        grid=grid,
        in_specs=in_specs,
        out_specs=pl.BlockSpec((1, tm, cout), lambda b, mi: (b, mi, 0)),
        compiler_params=_cparams(("parallel", "parallel")),
    )(*args)


def pointwise_conv(x, w, scale, bias, act, gate=None, residual=None):
    n, h, wd, cin = x.shape
    cout = w.shape[1]
    x3 = x.reshape(n, h * wd, cin)
    res3 = None if residual is None else residual.reshape(n, h * wd, cout)
    y = _matmul_affine3(x3, w, scale, bias, act, gate=gate, residual=res3)
    return y.reshape(n, h, wd, cout)


def stem_conv(x, w, scale, bias):
    """3x3 stride-2 conv via im2col (JAX glue on the tiny 3-channel input)
    + tiled Pallas fused matmul/BN/SiLU."""
    # TODO(synk): im2col patch construction still in JAX (3-channel input, negligible traffic).
    kh, kw, cin, cout = w.shape
    stride, pad = 2, (kh - 1) // 2
    xp = jnp.pad(x, ((0, 0), (pad, pad), (pad, pad), (0, 0)))
    n, hp, wp, _ = xp.shape
    ho = (hp - kh) // stride + 1
    wo = (wp - kw) // stride + 1
    cols = []
    for i in range(kh):
        for j in range(kw):
            cols.append(xp[:, i:i + (ho - 1) * stride + 1:stride,
                           j:j + (wo - 1) * stride + 1:stride, :])
    patches = jnp.stack(cols, axis=3).reshape(n, ho * wo, kh * kw * cin)
    y = _matmul_affine3(patches, w.reshape(kh * kw * cin, cout), scale, bias, act="silu")
    return y.reshape(n, ho, wo, cout)


def depthwise_conv(x, w, scale, bias, stride, act):
    """Depthwise conv with direct strided output.  For stride>1 the padded input is
    phase-decomposed (s*s stride-s subsampled planes) in the wrapper so the kernel only
    uses stride-1 shifted slices.  Also returns the fused global-average-pool (SE squeeze)."""
    n, h, wd, c = x.shape
    kh, kw, _ = w.shape
    pad = (kh - 1) // 2
    xp = jnp.pad(x, ((0, 0), (pad, pad), (pad, pad), (0, 0)))
    hp, wp = h + 2 * pad, wd + 2 * pad
    ho = (hp - kh) // stride + 1
    wo = (wp - kw) // stride + 1
    s = stride

    if s == 1:
        planes = [xp]
        hs, ws = hp, wp
        taps = tuple((i, j, 0, i, j) for i in range(kh) for j in range(kw))
    else:
        hp2 = ((hp + s - 1) // s) * s
        wp2 = ((wp + s - 1) // s) * s
        need_h = (kh - 1) // s + ho
        need_w = (kw - 1) // s + wo
        hp2 = max(hp2, need_h * s)
        wp2 = max(wp2, need_w * s)
        if (hp2, wp2) != (hp, wp):
            xp = jnp.pad(xp, ((0, 0), (0, hp2 - hp), (0, wp2 - wp), (0, 0)))
        hs, ws = hp2 // s, wp2 // s
        planes = [xp[:, p::s, q::s, :] for p in range(s) for q in range(s)]
        taps = tuple((i, j, (i % s) * s + (j % s), i // s, j // s)
                     for i in range(kh) for j in range(kw))

    num_planes = len(planes)
    in_specs = [pl.BlockSpec((1, hs, ws, c), lambda b: (b, 0, 0, 0))
                for _ in range(num_planes)]
    in_specs += [pl.BlockSpec((kh, kw, c), lambda b: (0, 0, 0)),
                 pl.BlockSpec((1, c), lambda b: (0, 0)),
                 pl.BlockSpec((1, c), lambda b: (0, 0))]
    out_shapes = (jax.ShapeDtypeStruct((n, ho, wo, c), ACT_DTYPE),
                  jax.ShapeDtypeStruct((n, 1, c), jnp.float32))
    out_specs = (pl.BlockSpec((1, ho, wo, c), lambda b: (b, 0, 0, 0)),
                 pl.BlockSpec((1, 1, c), lambda b: (b, 0, 0)))

    y, pooled = pl.pallas_call(
        functools.partial(_dw_kernel, taps=taps, num_planes=num_planes,
                          act=act, inv_hw=1.0 / float(ho * wo)),
        out_shape=out_shapes,
        grid=(n,),
        in_specs=in_specs,
        out_specs=out_specs,
        compiler_params=_cparams(("parallel",)),
    )(*planes, w, scale.reshape(1, c), bias.reshape(1, c))
    return y, pooled


def se_gate(pooled, w1, b1, w2, b2):
    n, _, c = pooled.shape
    csq = w1.shape[1]
    return pl.pallas_call(
        _se_fc_kernel,
        out_shape=jax.ShapeDtypeStruct((n, 1, c), jnp.float32),
        grid=(1,),
        in_specs=[_full_spec(pooled.shape), _full_spec(w1.shape),
                  _full_spec((1, csq)), _full_spec(w2.shape), _full_spec((1, c))],
        out_specs=_full_spec((n, 1, c)),
        compiler_params=_cparams(("arbitrary",)),
    )(pooled, w1, b1.reshape(1, csq), w2, b2.reshape(1, c))


def head_pool_classifier(x, w, scale, bias, fc_w, fc_b):
    n, h, wd, cin = x.shape
    chead = w.shape[1]
    nc = fc_w.shape[1]
    x3 = x.reshape(n, h * wd, cin)
    out = pl.pallas_call(
        functools.partial(_head_pool_fc_kernel, inv_hw=1.0 / float(h * wd)),
        out_shape=jax.ShapeDtypeStruct((n, 1, nc), jnp.float32),
        grid=(n,),
        in_specs=[pl.BlockSpec((1, h * wd, cin), lambda b: (b, 0, 0)),
                  pl.BlockSpec((cin, chead), lambda b: (0, 0)),
                  pl.BlockSpec((1, chead), lambda b: (0, 0)),
                  pl.BlockSpec((1, chead), lambda b: (0, 0)),
                  pl.BlockSpec((chead, nc), lambda b: (0, 0)),
                  pl.BlockSpec((1, nc), lambda b: (0, 0))],
        out_specs=pl.BlockSpec((1, 1, nc), lambda b: (b, 0, 0)),
        compiler_params=_cparams(("parallel",)),
    )(x3, w, scale.reshape(1, chead), bias.reshape(1, chead), fc_w,
      fc_b.reshape(1, nc))
    return out.reshape(n, nc)


# ------------------------------ parameter init ------------------------------

class _KeyGen:
    def __init__(self, key):
        self._key = key
        self._i = 0

    def __call__(self):
        self._i += 1
        return jax.random.fold_in(self._key, self._i)


def _init_bn(kg, c):
    g = 1.0 + 0.05 * jax.random.normal(kg(), (c,), jnp.float32)
    b = 0.05 * jax.random.normal(kg(), (c,), jnp.float32)
    m = 0.05 * jax.random.normal(kg(), (c,), jnp.float32)
    v = 1.0 + 0.05 * jnp.abs(jax.random.normal(kg(), (c,), jnp.float32))
    scale = g / jnp.sqrt(v + BN_EPS)
    return scale, b - m * scale


def _init_w(kg, shape, fan_in, dtype=jnp.float32):
    w = jax.random.normal(kg(), shape, jnp.float32) * (1.0 / math.sqrt(fan_in))
    return w.astype(dtype)


def init_params(num_classes, key):
    kg = _KeyGen(key)
    p = {}
    # stem: Conv2d(3, 32, 3, stride=2, pad=1) + BN + SiLU
    p["stem_w"] = _init_w(kg, (3, 3, 3, 32), 3 * 3 * 3, W_DTYPE)
    p["stem_scale"], p["stem_bias"] = _init_bn(kg, 32)
    blocks = []
    for (er, k, s, cin, cout, nl) in B0_CFG:
        for li in range(nl):
            b_cin = cin if li == 0 else cout
            b_s = s if li == 0 else 1
            cexp = b_cin * er
            csq = max(1, b_cin // 4)
            bp = {"expand_ratio": er, "kernel": k, "stride": b_s,
                  "cin": b_cin, "cout": cout}
            if er != 1:
                bp["exp_w"] = _init_w(kg, (b_cin, cexp), b_cin, W_DTYPE)
                bp["exp_scale"], bp["exp_bias"] = _init_bn(kg, cexp)
            bp["dw_w"] = _init_w(kg, (k, k, cexp), k * k, jnp.float32)
            bp["dw_scale"], bp["dw_bias"] = _init_bn(kg, cexp)
            bp["se_w1"] = _init_w(kg, (cexp, csq), cexp, jnp.float32)
            bp["se_b1"] = 0.01 * jax.random.normal(kg(), (csq,), jnp.float32)
            bp["se_w2"] = _init_w(kg, (csq, cexp), csq, jnp.float32)
            bp["se_b2"] = 0.01 * jax.random.normal(kg(), (cexp,), jnp.float32)
            bp["proj_w"] = _init_w(kg, (cexp, cout), cexp, W_DTYPE)
            bp["proj_scale"], bp["proj_bias"] = _init_bn(kg, cout)
            blocks.append(bp)
    p["blocks"] = blocks
    # head: Conv2d(320, 1280, 1) + BN + SiLU
    p["head_w"] = _init_w(kg, (320, 1280), 320, W_DTYPE)
    p["head_scale"], p["head_bias"] = _init_bn(kg, 1280)
    # classifier: Dropout(0.2) [identity at inference] + Linear(1280, num_classes)
    p["fc_w"] = _init_w(kg, (1280, num_classes), 1280, jnp.float32)
    p["fc_b"] = 0.01 * jax.random.normal(kg(), (num_classes,), jnp.float32)
    return p


# ------------------------------ forward pass ------------------------------

def mbconv_block(x, bp):
    use_res = bp["stride"] == 1 and bp["cin"] == bp["cout"]
    h = x
    if bp["expand_ratio"] != 1:
        h = pointwise_conv(h, bp["exp_w"], bp["exp_scale"], bp["exp_bias"], act="silu")
    h, pooled = depthwise_conv(h, bp["dw_w"], bp["dw_scale"], bp["dw_bias"],
                               bp["stride"], act="silu")
    gate = se_gate(pooled, bp["se_w1"], bp["se_b1"], bp["se_w2"], bp["se_b2"])
    # SE gate is applied inside the projection matmul kernel (no extra HBM pass);
    # stochastic depth is identity at inference time.
    h = pointwise_conv(h, bp["proj_w"], bp["proj_scale"], bp["proj_bias"], act="none",
                       gate=gate, residual=x if use_res else None)
    return h


def efficientnet_b0_forward(params, image_nchw, targets=None):
    """Matches EfficientNetB0.forward: returns (logits, None) when targets is None."""
    x = jnp.transpose(image_nchw, (0, 2, 3, 1)).astype(ACT_DTYPE)  # NCHW -> NHWC, bf16
    x = stem_conv(x, params["stem_w"], params["stem_scale"], params["stem_bias"])
    for bp in params["blocks"]:
        x = mbconv_block(x, bp)
    logits = head_pool_classifier(x, params["head_w"], params["head_scale"],
                                  params["head_bias"], params["fc_w"], params["fc_b"])
    # TODO(synk): CrossEntropyLoss training branch not implemented (targets=None path only).
    return logits, None


if __name__ == "__main__":
    key = jax.random.PRNGKey(0)
    num_classes = 10
    params = init_params(num_classes, jax.random.fold_in(key, 1))
    image = jax.random.normal(jax.random.fold_in(key, 2), (2, 3, 32, 32), jnp.float32)

    logits, loss = efficientnet_b0_forward(params, image, targets=None)
    jax.block_until_ready(logits)

    assert logits.shape == (2, num_classes), logits.shape
    assert loss is None
    assert bool(jnp.all(jnp.isfinite(logits)))
    print("KERNEL_OK")
</pallas_src>

<mosaic_0001>
module attributes {stable_mosaic.version = 11 : i64} {
  func.func @_mm_affine_kernel(%arg0: i32, %arg1: i32, %arg2: memref<1x256x27xbf16, #tpu.memory_space<vmem>>, %arg3: memref<27x32xbf16, #tpu.memory_space<vmem>>, %arg4: memref<1x32xf32, #tpu.memory_space<vmem>>, %arg5: memref<1x32xf32, #tpu.memory_space<vmem>>, %arg6: memref<1x256x32xbf16, #tpu.memory_space<vmem>>) attributes {dimension_semantics = [#tpu.dimension_semantics<parallel>, #tpu.dimension_semantics<parallel>], iteration_bounds = array<i64: 2, 1>, scalar_prefetch = 0 : i64, scratch_operands = 0 : i64, tpu.core_type = #tpu.core_type<tc>, window_params = [{transform_indices = @transform_0, window_bounds = array<i64: 1, 256, 27>}, {pipeline_mode = #tpu.pipeline_mode<synchronous>, transform_indices = @transform_1, window_bounds = array<i64: 27, 32>}, {pipeline_mode = #tpu.pipeline_mode<synchronous>, transform_indices = @transform_2, window_bounds = array<i64: 1, 32>}, {pipeline_mode = #tpu.pipeline_mode<synchronous>, transform_indices = @transform_3, window_bounds = array<i64: 1, 32>}, {transform_indices = @transform_4, window_bounds = array<i64: 1, 256, 32>}]} {
    %c0 = arith.constant 0 : index
    %c0_0 = arith.constant 0 : index
    %c0_1 = arith.constant 0 : index
    %0 = vector.load %arg2[%c0, %c0_0, %c0_1] : memref<1x256x27xbf16, #tpu.memory_space<vmem>>, vector<1x256x27xbf16>
    %1 = vector.shape_cast %0 : vector<1x256x27xbf16> to vector<256x27xbf16>
    %c0_2 = arith.constant 0 : index
    %c0_3 = arith.constant 0 : index
    %2 = vector.load %arg3[%c0_2, %c0_3] : memref<27x32xbf16, #tpu.memory_space<vmem>>, vector<27x32xbf16>
    %cst = arith.constant dense<0.000000e+00> : vector<256x32xf32>
    %3 = tpu.matmul %1, %2, %cst {dimension_numbers = #tpu.dot_dimension_numbers<[1], [0], [0], [1], [0, 0, 1, 1], [], []>} : vector<256x27xbf16>, vector<27x32xbf16>, vector<256x32xf32> -> vector<256x32xf32>
    %c0_4 = arith.constant 0 : index
    %c0_5 = arith.constant 0 : index
    %4 = vector.load %arg4[%c0_4, %c0_5] : memref<1x32xf32, #tpu.memory_space<vmem>>, vector<1x32xf32>
    %5 = vector.broadcast %4 : vector<1x32xf32> to vector<256x32xf32>
    %6 = arith.mulf %3, %5 : vector<256x32xf32>
    %c0_6 = arith.constant 0 : index
    %c0_7 = arith.constant 0 : index
    %7 = vector.load %arg5[%c0_6, %c0_7] : memref<1x32xf32, #tpu.memory_space<vmem>>, vector<1x32xf32>
    %8 = vector.broadcast %7 : vector<1x32xf32> to vector<256x32xf32>
    %9 = arith.addf %6, %8 : vector<256x32xf32>
    %10 = arith.negf %9 : vector<256x32xf32>
    %11 = math.exp %10 : vector<256x32xf32>
    %cst_8 = arith.constant 1.000000e+00 : f32
    %12 = vector.broadcast %cst_8 : f32 to vector<256x32xf32>
    %13 = arith.addf %12, %11 : vector<256x32xf32>
    %14 = arith.divf %12, %13 : vector<256x32xf32>
    %15 = arith.mulf %9, %14 : vector<256x32xf32>
    %16 = arith.truncf %15 : vector<256x32xf32> to vector<256x32xbf16>
    %c0_9 = arith.constant 0 : index
    %c0_10 = arith.constant 0 : index
    %c0_11 = arith.constant 0 : index
    %17 = vector.load %arg6[%c0_9, %c0_10, %c0_11] : memref<1x256x32xbf16, #tpu.memory_space<vmem>>, vector<1x256x32xbf16>
    %18 = vector.shape_cast %17 : vector<1x256x32xbf16> to vector<256x32xbf16>
    %19 = vector.shape_cast %16 : vector<256x32xbf16> to vector<1x256x32xbf16>
    tpu.vector_store %arg6[%c0_9, %c0_10, %c0_11], %19 {strides = array<i32>} : memref<1x256x32xbf16, #tpu.memory_space<vmem>>, vector<1x256x32xbf16>,
    return
  }
  func.func @transform_0(%arg0: i32, %arg1: i32) -> (i32, i32, i32) {
    %c0_i32 = arith.constant 0 : i32
    %c0_i32_0 = arith.constant 0 : i32
    return %arg0, %arg1, %c0_i32 : i32, i32, i32
  }
  func.func @transform_1(%arg0: i32, %arg1: i32) -> (i32, i32) {
    %c0_i32 = arith.constant 0 : i32
    %c0_i32_0 = arith.constant 0 : i32
    %c0_i32_1 = arith.constant 0 : i32
    return %c0_i32, %c0_i32_0 : i32, i32
  }
  func.func @transform_2(%arg0: i32, %arg1: i32) -> (i32, i32) {
    %c0_i32 = arith.constant 0 : i32
    %c0_i32_0 = arith.constant 0 : i32
    %c0_i32_1 = arith.constant 0 : i32
    return %c0_i32, %c0_i32_0 : i32, i32
  }
  func.func @transform_3(%arg0: i32, %arg1: i32) -> (i32, i32) {
    %c0_i32 = arith.constant 0 : i32
    %c0_i32_0 = arith.constant 0 : i32
    %c0_i32_1 = arith.constant 0 : i32
    return %c0_i32, %c0_i32_0 : i32, i32
  }
  func.func @transform_4(%arg0: i32, %arg1: i32) -> (i32, i32, i32) {
    %c0_i32 = arith.constant 0 : i32
    %c0_i32_0 = arith.constant 0 : i32
    return %arg0, %arg1, %c0_i32 : i32, i32, i32
  }
}

</mosaic_0001>

<llo_original>
// kernel: tpu_custom_call.1
$region0: #{tpu_custom_call.1}
  #allocation0 [shape = 'u32[]', space=smem, size = 0x4, offset = 0x4, fixed_abs, tag = 'smem constant byte address 0x4 - core index']
  #allocation1 [shape = 'u32[72,128]{1,0:T(1,128)}', space=vmem, size = 0x9000, scoped, tag = 'internal scratch']
  %s0 = inlined_call_operand.vmem [shape: bf16[2,256,27], index: 0, kind: input, shape index: {}]
  %s1 = inlined_call_operand.vmem [shape: bf16[27,32], index: 1, kind: input, shape index: {}]
  %s2 = inlined_call_operand.vmem [shape: f32[1,32], index: 2, kind: input, shape index: {}]
  %s3 = inlined_call_operand.vmem [shape: f32[1,32], index: 3, kind: input, shape index: {}]
  %s4 = inlined_call_operand.vmem [shape: bf16[2,256,32], index: 4, kind: output, shape index: {}]
  %s5 = sld [smem:[#allocation0]]
  $region49: #{tpu_custom_call.1} parent=0
    _
  %s7 = ssub.s32 1, %s5
  %s8 = scalar_select 0, %s7, %s5
  loop: start=0, step=1, limit=4
  $region2: #{tpu_custom_call.1} parent=0 // loop_pre_header
    _
  $region3: #{tpu_custom_call.1} parent=0 // loop_header
    %s10 = sphi 0, %s14
    %p11 = scmp.ge.s32.totalorder %s10, 4
    %s17 = sphi 0, %s29
    %s18 = sphi 0, %s25
    %s19 = sphi 0, %s17
    %s20 = sphi 0, %s18
    %s21 = sphi 0, %s19
    %s22 = sphi 0, %s20
    %s34 = sphi 0, %s36
    %s37 = sphi 0, %s34
    %s38 = sphi 0, %s37
    %s54 = sphi 0, %s38
    %s58 = sphi 0, %s58
    %s60 = sphi 0, %s58
    %s61 = sphi 0, %s60
    %s75 = sphi 0, %s61
    %s79 = sphi 0, %s79
    %s81 = sphi 0, %s79
    %s82 = sphi 0, %s81
    %s96 = sphi 0, %s82
    %s100 = sphi 0, %s100
    %s102 = sphi 0, %s100
    %s103 = sphi 0, %s102
    %s117 = sphi 0, %s103
    %s125 = sphi 0, %s127
    %s128 = sphi 0, %s125
    %s129 = sphi 0, %s128
    %s145 = sphi 0, %s129
  $region4: #{tpu_custom_call.1} parent=0 // loop_header_branch
    %13 = sbr.rel (%p11) target = $region8
  $region5: #{tpu_custom_call.1} parent=0 // loop_body
    %s15 = ssub.s32 %s10, 1
    %s16 = ssub.s32 %s10, 2
    %s23 = sadd.s32 1, %s18
    %p24 = scmp.ge.s32.totalorder %s23, 1
    %s25 = scalar_select %p24, 0, %s23
    %s26 = sadd.s32 1, %s17
    %s27 = scalar_select %p24, %s26, %s17
    %p28 = scmp.ge.s32.totalorder %s27, 2
    %s29 = scalar_select %p28, 0, %s27
    %s30 = ssub.s32 %s17, %s29
    %s31 = ssub.s32 %s18, %s25
    %s32 = sor.u32 %s30, %s31
    %p33 = scmp.eq.s32.totalorder %s32, 0
    %s35 = sadd.s32 %s34, 1
    %s36 = scalar_select %p33, %s34, %s35
    %p39 = pneg %p33
    %p40 = scmp.eq.s32.totalorder %s10, 1
    %p41 = por %p39, %p40
    %p42 = scmp.ne.s32.totalorder %s34, %s37
    %p43 = scmp.eq.s32.totalorder %s10, 0
    %p44 = por %p42, %p43
    %p45 = scmp.ne.s32.totalorder %s34, %s37
    %p46 = scmp.eq.s32.totalorder %s15, 1
    %p47 = por %p45, %p46
    %p48 = scmp.ne.s32.totalorder %s37, %s38
    %p49 = scmp.eq.s32.totalorder %s15, 0
    %p50 = por %p48, %p49
    %p51 = scmp.ne.s32.totalorder %s37, %s38
    %p52 = scmp.eq.s32.totalorder %s16, 1
    %p53 = por %p51, %p52
    %p55 = scmp.ne.s32.totalorder %s38, %s54
    %p56 = scmp.eq.s32.totalorder %s16, 0
    %p57 = por %p55, %p56
    %s59 = sadd.s32 %s58, 1
    %p62 = scmp.eq.s32.totalorder %s10, 1
    %p63 = scmp.ne.s32.totalorder %s58, %s60
    %p64 = scmp.eq.s32.totalorder %s10, 0
    %p65 = por %p63, %p64
    %p66 = scmp.ne.s32.totalorder %s58, %s60
    %p67 = scmp.eq.s32.totalorder %s15, 1
    %p68 = por %p66, %p67
    %p69 = scmp.ne.s32.totalorder %s60, %s61
    %p70 = scmp.eq.s32.totalorder %s15, 0
    %p71 = por %p69, %p70
    %p72 = scmp.ne.s32.totalorder %s60, %s61
    %p73 = scmp.eq.s32.totalorder %s16, 1
    %p74 = por %p72, %p73
    %p76 = scmp.ne.s32.totalorder %s61, %s75
    %p77 = scmp.eq.s32.totalorder %s16, 0
    %p78 = por %p76, %p77
    %s80 = sadd.s32 %s79, 1
    %p83 = scmp.eq.s32.totalorder %s10, 1
    %p84 = scmp.ne.s32.totalorder %s79, %s81
    %p85 = scmp.eq.s32.totalorder %s10, 0
    %p86 = por %p84, %p85
    %p87 = scmp.ne.s32.totalorder %s79, %s81
    %p88 = scmp.eq.s32.totalorder %s15, 1
    %p89 = por %p87, %p88
    %p90 = scmp.ne.s32.totalorder %s81, %s82
    %p91 = scmp.eq.s32.totalorder %s15, 0
    %p92 = por %p90, %p91
    %p93 = scmp.ne.s32.totalorder %s81, %s82
    %p94 = scmp.eq.s32.totalorder %s16, 1
    %p95 = por %p93, %p94
    %p97 = scmp.ne.s32.totalorder %s82, %s96
    %p98 = scmp.eq.s32.totalorder %s16, 0
    %p99 = por %p97, %p98
    %s101 = sadd.s32 %s100, 1
    %p104 = scmp.eq.s32.totalorder %s10, 1
    %p105 = scmp.ne.s32.totalorder %s100, %s102
    %p106 = scmp.eq.s32.totalorder %s10, 0
    %p107 = por %p105, %p106
    %p108 = scmp.ne.s32.totalorder %s100, %s102
    %p109 = scmp.eq.s32.totalorder %s15, 1
    %p110 = por %p108, %p109
    %p111 = scmp.ne.s32.totalorder %s102, %s103
    %p112 = scmp.eq.s32.totalorder %s15, 0
    %p113 = por %p111, %p112
    %p114 = scmp.ne.s32.totalorder %s102, %s103
    %p115 = scmp.eq.s32.totalorder %s16, 1
    %p116 = por %p114, %p115
    %p118 = scmp.ne.s32.totalorder %s103, %s117
    %p119 = scmp.eq.s32.totalorder %s16, 0
    %p120 = por %p118, %p119
    %s121 = ssub.s32 %s17, %s29
    %s122 = ssub.s32 %s18, %s25
    %s123 = sor.u32 %s121, %s122
    %p124 = scmp.eq.s32.totalorder %s123, 0
    %s126 = sadd.s32 %s125, 1
    %s127 = scalar_select %p124, %s125, %s126
    %p130 = pneg %p124
    %p131 = scmp.eq.s32.totalorder %s10, 1
    %p132 = por %p130, %p131
    %p133 = scmp.ne.s32.totalorder %s125, %s128
    %p134 = scmp.eq.s32.totalorder %s10, 0
    %p135 = por %p133, %p134
    %p136 = scmp.ne.s32.totalorder %s125, %s128
    %p137 = scmp.eq.s32.totalorder %s15, 1
    %p138 = por %p136, %p137
    %p139 = scmp.ne.s32.totalorder %s128, %s129
    %p140 = scmp.eq.s32.totalorder %s15, 0
    %p141 = por %p139, %p140
    %p142 = scmp.ne.s32.totalorder %s128, %s129
    %p143 = scmp.eq.s32.totalorder %s16, 1
    %p144 = por %p142, %p143
    %p146 = scmp.ne.s32.totalorder %s129, %s145
    %p147 = scmp.eq.s32.totalorder %s16, 0
    %p148 = por %p146, %p147
    %p149 = scmp.le.s32.totalorder 1, %s10
    %p150 = scmp.lt.s32.totalorder %s10, 3
    %p151 = pnand %p149, %p150
    %p152 = pneg %p151
    // Predicated region
    $region9: #{tpu_custom_call.1} parent=5 // pred_check
      _
    $region10: #{tpu_custom_call.1} parent=5 // pred_check_branch
      %154 = sbr.rel (%p151) target = $region12
    $region11: #{tpu_custom_call.1} parent=5 // pred_region
      %s155 = ssub.s32 %s10, 1
      // Predicated region
      $region13: #{tpu_custom_call.1} parent=11 // pred_check
        %p156 = pneg %p71
      $region14: #{tpu_custom_call.1} parent=11 // pred_check_branch
        %158 = sbr.rel (%p156) target = $region16
      $region15: #{tpu_custom_call.1} parent=11 // pred_region
        _
      $region16: #{tpu_custom_call.1} parent=11 // pred_fallthru
        _
      // Predicated region
      $region17: #{tpu_custom_call.1} parent=11 // pred_check
        %p159 = pneg %p92
      $region18: #{tpu_custom_call.1} parent=11 // pred_check_branch
        %161 = sbr.rel (%p159) target = $region20
      $region19: #{tpu_custom_call.1} parent=11 // pred_region
        _
      $region20: #{tpu_custom_call.1} parent=11 // pred_fallthru
        _
      // Predicated region
      $region21: #{tpu_custom_call.1} parent=11 // pred_check
        %p162 = pneg %p113
      $region22: #{tpu_custom_call.1} parent=11 // pred_check_branch
        %164 = sbr.rel (%p162) target = $region24
      $region23: #{tpu_custom_call.1} parent=11 // pred_region
        _
      $region24: #{tpu_custom_call.1} parent=11 // pred_fallthru
        _
    $region12: #{tpu_custom_call.1} parent=5 // pred_fallthru
      _
    %p165 = scmp.lt.s32.totalorder %s10, 2
    // Predicated region
    $region25: #{tpu_custom_call.1} parent=5 // pred_check
      %p166 = pneg %p165
    $region26: #{tpu_custom_call.1} parent=5 // pred_check_branch
      %168 = sbr.rel (%p166) target = $region28
    $region27: #{tpu_custom_call.1} parent=5 // pred_region
      // Predicated region
      $region29: #{tpu_custom_call.1} parent=27 // pred_check
        %p169 = pneg %p44
      $region30: #{tpu_custom_call.1} parent=27 // pred_check_branch
        %171 = sbr.rel (%p169) target = $region32
      $region31: #{tpu_custom_call.1} parent=27 // pred_region
        %s172 = smul.u32 32, %s18
        %p173 = scmp.lt.s32.totalorder %s17, 1
        %s174 = scalar_select %p173, %s17, 1
        %p175 = scmp.lt.s32.totalorder %s172, 31
        %s176 = scalar_select %p175, %s172, 31
        %s177 = smul.addr %s174, 32
        %s178 = sadd.s32 %s176, %s177
        %s179 = smul.addr %s178, 4
        %s180 = scalar_lea.vmem %s0, %s179
        %s181 = smul.u32 32, %s18
      $region32: #{tpu_custom_call.1} parent=27 // pred_fallthru
        _
    $region28: #{tpu_custom_call.1} parent=5 // pred_fallthru
      _
    %p182 = scmp.le.s32.totalorder 1, %s10
    %p183 = scmp.lt.s32.totalorder %s10, 3
    %p184 = pnand %p182, %p183
    %p185 = pneg %p184
    // Predicated region
    $region33: #{tpu_custom_call.1} parent=5 // pred_check
      _
    $region34: #{tpu_custom_call.1} parent=5 // pred_check_branch
      %187 = sbr.rel (%p184) target = $region36
    $region35: #{tpu_custom_call.1} parent=5 // pred_region
      %s188 = ssub.s32 %s10, 1
      %s189 = smul.u32 32, %s20
      %p190 = scmp.lt.s32.totalorder %s19, 1
      %s191 = scalar_select %p190, %s19, 1
      %p192 = scmp.lt.s32.totalorder %s189, 31
      %s193 = scalar_select %p192, %s189, 31
      %s194 = smul.addr %s191, 32
      %s195 = sadd.s32 %s193, %s194
      %s196 = smul.addr %s195, 4
      %s197 = scalar_lea.vmem %s0, %s196
      %p198 = pneg %p50
      %p199 = pneg %p47
      %p200 = pneg %p71
      %p201 = pneg %p68
      %p202 = pneg %p92
      %p203 = pneg %p89
      %p204 = pneg %p113
      %p205 = pneg %p110
      %p206 = pneg %p141
      %p207 = pneg %p138
      %s208 = smul.u32 32, %s20
      %p209 = scmp.lt.s32.totalorder %s19, 1
      %s210 = scalar_select %p209, %s19, 1
      %p211 = scmp.lt.s32.totalorder %s208, 31
      %s212 = scalar_select %p211, %s208, 31
      %s213 = smul.addr %s210, 32
      %s214 = sadd.s32 %s212, %s213
      %s215 = smul.addr %s214, 4
      %s216 = scalar_lea.vmem %s4, %s215
      %s217 = smul.u32 32, %s20
      %p218 = scmp.lt.s32.totalorder %s19, 1
      %s219 = scalar_select %p218, %s19, 1
      %p220 = scmp.lt.s32.totalorder %s217, 31
      %s221 = scalar_select %p220, %s217, 31
      %s222 = smul.addr %s219, 32
      %s223 = sadd.s32 %s221, %s222
      %s224 = smul.addr %s223, 4
      %s225 = scalar_lea.vmem %s0, %s224
      %s226 = smul.u32 32, %s20
      %s227 = smul.u32 32, %s20
      %p228 = scmp.lt.s32.totalorder %s19, 1
      %s229 = scalar_select %p228, %s19, 1
      %p230 = scmp.lt.s32.totalorder %s227, 31
      %s231 = scalar_select %p230, %s227, 31
      %s232 = smul.addr %s229, 32
      %s233 = sadd.s32 %s231, %s232
      %s234 = smul.addr %s233, 4
      %s235 = scalar_lea.vmem %s4, %s234
      %s236 = smul.u32 32, %s20
      %v238 = vld [vmem:[%s225] sm:$0xf]
      %v239 = vld [vmem:[%s225 + $0x4] sm:$0xf]
      %v240 = vld [vmem:[%s225 + $0x8] sm:$0xf]
      %v241 = vld [vmem:[%s225 + $0xc] sm:$0xf]
      %v242 = vld [vmem:[%s225 + $0x10] sm:$0xf]
      %v243 = vld [vmem:[%s225 + $0x14] sm:$0xf]
      %v244 = vld [vmem:[%s225 + $0x18] sm:$0xf]
      %v245 = vld [vmem:[%s225 + $0x1c] sm:$0xf]
      %v246 = vld [vmem:[%s225 + $0x20] sm:$0xf]
      %v247 = vld [vmem:[%s225 + $0x24] sm:$0xf]
      %v248 = vld [vmem:[%s225 + $0x28] sm:$0xf]
      %v249 = vld [vmem:[%s225 + $0x2c] sm:$0xf]
      %v250 = vld [vmem:[%s225 + $0x30] sm:$0xf]
      %v251 = vld [vmem:[%s225 + $0x34] sm:$0xf]
      %v252 = vld [vmem:[%s225 + $0x38] sm:$0xf]
      %v253 = vld [vmem:[%s225 + $0x3c] sm:$0xf]
      %v254 = vld [vmem:[%s225 + $0x40] sm:$0xf]
      %v255 = vld [vmem:[%s225 + $0x44] sm:$0xf]
      %v256 = vld [vmem:[%s225 + $0x48] sm:$0xf]
      %v257 = vld [vmem:[%s225 + $0x4c] sm:$0xf]
      %v258 = vld [vmem:[%s225 + $0x50] sm:$0xf]
      %v259 = vld [vmem:[%s225 + $0x54] sm:$0xf]
      %v260 = vld [vmem:[%s225 + $0x58] sm:$0xf]
      %v261 = vld [vmem:[%s225 + $0x5c] sm:$0xf]
      %v262 = vld [vmem:[%s225 + $0x60] sm:$0xf]
      %v263 = vld [vmem:[%s225 + $0x64] sm:$0xf]
      %v264 = vld [vmem:[%s225 + $0x68] sm:$0xf]
      %v265 = vld [vmem:[%s225 + $0x6c] sm:$0xf]
      %v266 = vld [vmem:[%s225 + $0x70] sm:$0xf]
      %v267 = vld [vmem:[%s225 + $0x74] sm:$0xf]
      %v268 = vld [vmem:[%s225 + $0x78] sm:$0xf]
      %v269 = vld [vmem:[%s225 + $0x7c] sm:$0xf]
      %v270 = vld [vmem:[%s1] sm:$0xf]
      %v271 = vld [vmem:[%s1 + $0x4] sm:$0xf]
      %v272 = vld [vmem:[%s1 + $0x8] sm:$0xf]
      %v273 = vld [vmem:[%s1 + $0xc] sm:$0x3]
      %v306 = vunpack.c.l.b16 %v238
      %v307 = vunpack.c.l.b16 %v239
      %v308 = vunpack.c.l.b16 %v240
      %v309 = vunpack.c.l.b16 %v241
      %v310 = vunpack.c.l.b16 %v242
      %v311 = vunpack.c.l.b16 %v243
      %v312 = vunpack.c.l.b16 %v244
      %v313 = vunpack.c.l.b16 %v245
      %v314 = vunpack.c.l.b16 %v246
      %v315 = vunpack.c.l.b16 %v247
      %v316 = vunpack.c.l.b16 %v248
      %v317 = vunpack.c.l.b16 %v249
      %v318 = vunpack.c.l.b16 %v250
      %v319 = vunpack.c.l.b16 %v251
      %v320 = vunpack.c.l.b16 %v252
      %v321 = vunpack.c.l.b16 %v253
      %v322 = vunpack.c.l.b16 %v254
      %v323 = vunpack.c.l.b16 %v255
      %v324 = vunpack.c.l.b16 %v256
      %v325 = vunpack.c.l.b16 %v257
      %v326 = vunpack.c.l.b16 %v258
      %v327 = vunpack.c.l.b16 %v259
      %v328 = vunpack.c.l.b16 %v260
      %v329 = vunpack.c.l.b16 %v261
      %v330 = vunpack.c.l.b16 %v262
      %v331 = vunpack.c.l.b16 %v263
      %v332 = vunpack.c.l.b16 %v264
      %v333 = vunpack.c.l.b16 %v265
      %v334 = vunpack.c.l.b16 %v266
      %v335 = vunpack.c.l.b16 %v267
      %v336 = vunpack.c.l.b16 %v268
      %v337 = vunpack.c.l.b16 %v269
      %v338 = vpack.c.b16 %v307, %v306
      %v339 = vpack.c.b16 %v309, %v308
      %v340 = vpack.c.b16 %v311, %v310
      %v341 = vpack.c.b16 %v313, %v312
      %v342 = vpack.c.b16 %v315, %v314
      %v343 = vpack.c.b16 %v317, %v316
      %v344 = vpack.c.b16 %v319, %v318
      %v345 = vpack.c.b16 %v321, %v320
      %v346 = vpack.c.b16 %v323, %v322
      %v347 = vpack.c.b16 %v325, %v324
      %v348 = vpack.c.b16 %v327, %v326
      %v349 = vpack.c.b16 %v329, %v328
      %v350 = vpack.c.b16 %v331, %v330
      %v351 = vpack.c.b16 %v333, %v332
      %v352 = vpack.c.b16 %v335, %v334
      %v353 = vpack.c.b16 %v337, %v336
      %v358 = vunpack.c.l.b16 %v270
      %v359 = vunpack.c.l.b16 %v271
      %v360 = vunpack.c.l.b16 %v272
      %v361 = vunpack.c.l.b16 %v273
      %v362 = vpack.c.b16 %v359, %v358
      %v363 = vpack.c.b16 %v361, %v360
      %vm365 = vcmask 220160
      %v367 = vsel %vm365, %v338, 0
      %v370 = vsel %vm365, %v339, 0
      %v373 = vsel %vm365, %v340, 0
      %v376 = vsel %vm365, %v341, 0
      %v379 = vsel %vm365, %v342, 0
      %v382 = vsel %vm365, %v343, 0
      %v385 = vsel %vm365, %v344, 0
      %v388 = vsel %vm365, %v345, 0
      %v391 = vsel %vm365, %v346, 0
      %v394 = vsel %vm365, %v347, 0
      %v397 = vsel %vm365, %v348, 0
      %v400 = vsel %vm365, %v349, 0
      %v403 = vsel %vm365, %v350, 0
      %v406 = vsel %vm365, %v351, 0
      %v409 = vsel %vm365, %v352, 0
      %v412 = vsel %vm365, %v353, 0
      %vm414 = vcmask 1044480
      %vm415 = vcmask 1045504
      %v416 = vsel %vm414, 4294967295, 65535
      %v417 = vsel %vm415, %v416, 0
      %v419 = vand.u32 %v363, %v417
      %421 = vmatpush.bf16.msra.mxu0 0
      %422 = vmatpush.bf16.msra.mxu0 0
      %423 = vmatpush.bf16.msra.mxu0 0
      %424 = vmatpush.bf16.msra.mxu0 0
      %425 = vmatpush.bf16.msra.mxu0 0
      %426 = vmatpush.bf16.msra.mxu0 0
      %427 = vmatpush.bf16.msra.mxu0 %v419
      %428 = vmatpush.bf16.msra.mxu0 %v362
      %429 = vmatmul.bf16.gmra.mxu0 %v367
      %v430 = vpop.f32.mrf.mxu0
      %v431 = vadd.f32 0.0, %v430
      %v432 = vpop.f32.mrf.mxu0
      %v433 = vadd.f32 0.0, %v432
      %434 = vmatmul.bf16.gmra.mxu0 %v370
      %v435 = vpop.f32.mrf.mxu0
      %v436 = vadd.f32 0.0, %v435
      %v437 = vpop.f32.mrf.mxu0
      %v438 = vadd.f32 0.0, %v437
      %439 = vmatmul.bf16.gmra.mxu0 %v373
      %v440 = vpop.f32.mrf.mxu0
      %v441 = vadd.f32 0.0, %v440
      %v442 = vpop.f32.mrf.mxu0
      %v443 = vadd.f32 0.0, %v442
      %444 = vmatmul.bf16.gmra.mxu0 %v376
      %v445 = vpop.f32.mrf.mxu0
      %v446 = vadd.f32 0.0, %v445
      %v447 = vpop.f32.mrf.mxu0
      %v448 = vadd.f32 0.0, %v447
      %449 = vmatmul.bf16.gmra.mxu0 %v379
      %v450 = vpop.f32.mrf.mxu0
      %v451 = vadd.f32 0.0, %v450
      %v452 = vpop.f32.mrf.mxu0
      %v453 = vadd.f32 0.0, %v452
      %454 = vmatmul.bf16.gmra.mxu0 %v382
      %v455 = vpop.f32.mrf.mxu0
      %v456 = vadd.f32 0.0, %v455
      %v457 = vpop.f32.mrf.mxu0
      %v458 = vadd.f32 0.0, %v457
      %459 = vmatmul.bf16.gmra.mxu0 %v385
      %v460 = vpop.f32.mrf.mxu0
      %v461 = vadd.f32 0.0, %v460
      %v462 = vpop.f32.mrf.mxu0
      %v463 = vadd.f32 0.0, %v462
      %464 = vmatmul.bf16.gmra.mxu0 %v388
      %v465 = vpop.f32.mrf.mxu0
      %v466 = vadd.f32 0.0, %v465
      %v467 = vpop.f32.mrf.mxu0
      %v468 = vadd.f32 0.0, %v467
      %469 = vmatmul.bf16.gmra.mxu0 %v391
      %v470 = vpop.f32.mrf.mxu0
      %v471 = vadd.f32 0.0, %v470
      %v472 = vpop.f32.mrf.mxu0
      %v473 = vadd.f32 0.0, %v472
      %474 = vmatmul.bf16.gmra.mxu0 %v394
      %v475 = vpop.f32.mrf.mxu0
      %v476 = vadd.f32 0.0, %v475
      %v477 = vpop.f32.mrf.mxu0
      %v478 = vadd.f32 0.0, %v477
      %479 = vmatmul.bf16.gmra.mxu0 %v397
      %v480 = vpop.f32.mrf.mxu0
      %v481 = vadd.f32 0.0, %v480
      %v482 = vpop.f32.mrf.mxu0
      %v483 = vadd.f32 0.0, %v482
      %484 = vmatmul.bf16.gmra.mxu0 %v400
      %v485 = vpop.f32.mrf.mxu0
      %v486 = vadd.f32 0.0, %v485
      %v487 = vpop.f32.mrf.mxu0
      %v488 = vadd.f32 0.0, %v487
      %489 = vmatmul.bf16.gmra.mxu0 %v403
      %v490 = vpop.f32.mrf.mxu0
      %v491 = vadd.f32 0.0, %v490
      %v492 = vpop.f32.mrf.mxu0
      %v493 = vadd.f32 0.0, %v492
      %494 = vmatmul.bf16.gmra.mxu0 %v406
      %v495 = vpop.f32.mrf.mxu0
      %v496 = vadd.f32 0.0, %v495
      %v497 = vpop.f32.mrf.mxu0
      %v498 = vadd.f32 0.0, %v497
      %499 = vmatmul.bf16.gmra.mxu0 %v409
      %v500 = vpop.f32.mrf.mxu0
      %v501 = vadd.f32 0.0, %v500
      %v502 = vpop.f32.mrf.mxu0
      %v503 = vadd.f32 0.0, %v502
      %504 = vmatmul.bf16.gmra.mxu0 %v412
      %v505 = vpop.f32.mrf.mxu0
      %v506 = vadd.f32 0.0, %v505
      %v507 = vpop.f32.mrf.mxu0
      %v508 = vadd.f32 0.0, %v507
      %509 = vdwg.mxu0
      %v510 = vld [vmem:[%s2] sm:$0x1]
      %v512 = vperm.slane %v510, 0
      %v514 = vmul.f32 %v431, %v512
      %v515 = vmul.f32 %v433, %v512
      %v516 = vmul.f32 %v436, %v512
      %v517 = vmul.f32 %v438, %v512
      %v518 = vmul.f32 %v441, %v512
      %v519 = vmul.f32 %v443, %v512
      %v520 = vmul.f32 %v446, %v512
      %v521 = vmul.f32 %v448, %v512
      %v522 = vmul.f32 %v451, %v512
      %v523 = vmul.f32 %v453, %v512
      %v524 = vmul.f32 %v456, %v512
      %v525 = vmul.f32 %v458, %v512
      %v526 = vmul.f32 %v461, %v512
      %v527 = vmul.f32 %v463, %v512
      %v528 = vmul.f32 %v466, %v512
      %v529 = vmul.f32 %v468, %v512
      %v530 = vmul.f32 %v471, %v512
      %v531 = vmul.f32 %v473, %v512
      %v532 = vmul.f32 %v476, %v512
      %v533 = vmul.f32 %v478, %v512
      %v534 = vmul.f32 %v481, %v512
      %v535 = vmul.f32 %v483, %v512
      %v536 = vmul.f32 %v486, %v512
      %v537 = vmul.f32 %v488, %v512
      %v538 = vmul.f32 %v491, %v512
      %v539 = vmul.f32 %v493, %v512
      %v540 = vmul.f32 %v496, %v512
      %v541 = vmul.f32 %v498, %v512
      %v542 = vmul.f32 %v501, %v512
      %v543 = vmul.f32 %v503, %v512
      %v544 = vmul.f32 %v506, %v512
      %v545 = vmul.f32 %v508, %v512
      %v546 = vld [vmem:[%s3] sm:$0x1]
      %v548 = vperm.slane %v546, 0
      %v550 = vadd.f32 %v514, %v548
      %v551 = vadd.f32 %v515, %v548
      %v552 = vadd.f32 %v516, %v548
      %v553 = vadd.f32 %v517, %v548
      %v554 = vadd.f32 %v518, %v548
      %v555 = vadd.f32 %v519, %v548
      %v556 = vadd.f32 %v520, %v548
      %v557 = vadd.f32 %v521, %v548
      %v558 = vadd.f32 %v522, %v548
      %v559 = vadd.f32 %v523, %v548
      %v560 = vadd.f32 %v524, %v548
      %v561 = vadd.f32 %v525, %v548
      %v562 = vadd.f32 %v526, %v548
      %v563 = vadd.f32 %v527, %v548
      %v564 = vadd.f32 %v528, %v548
      %v565 = vadd.f32 %v529, %v548
      %v566 = vadd.f32 %v530, %v548
      %v567 = vadd.f32 %v531, %v548
      %v568 = vadd.f32 %v532, %v548
      %v569 = vadd.f32 %v533, %v548
      %v570 = vadd.f32 %v534, %v548
      %v571 = vadd.f32 %v535, %v548
      %v572 = vadd.f32 %v536, %v548
      %v573 = vadd.f32 %v537, %v548
      %v574 = vadd.f32 %v538, %v548
      %v575 = vadd.f32 %v539, %v548
      %v576 = vadd.f32 %v540, %v548
      %v577 = vadd.f32 %v541, %v548
      %v578 = vadd.f32 %v542, %v548
      %v579 = vadd.f32 %v543, %v548
      %v580 = vadd.f32 %v544, %v548
      %v581 = vadd.f32 %v545, %v548
      %v582 = vxor.u32 %v550, 2147483648
      %v583 = vxor.u32 %v551, 2147483648
      %v584 = vxor.u32 %v552, 2147483648
      %v585 = vxor.u32 %v553, 2147483648
      %v586 = vxor.u32 %v554, 2147483648
      %v587 = vxor.u32 %v555, 2147483648
      %v588 = vxor.u32 %v556, 2147483648
      %v589 = vxor.u32 %v557, 2147483648
      %v590 = vxor.u32 %v558, 2147483648
      %v591 = vxor.u32 %v559, 2147483648
      %v592 = vxor.u32 %v560, 2147483648
      %v593 = vxor.u32 %v561, 2147483648
      %v594 = vxor.u32 %v562, 2147483648
      %v595 = vxor.u32 %v563, 2147483648
      %v596 = vxor.u32 %v564, 2147483648
      %v597 = vxor.u32 %v565, 2147483648
      %v598 = vxor.u32 %v566, 2147483648
      %v599 = vxor.u32 %v567, 2147483648
      %v600 = vxor.u32 %v568, 2147483648
      %v601 = vxor.u32 %v569, 2147483648
      %v602 = vxor.u32 %v570, 2147483648
      %v603 = vxor.u32 %v571, 2147483648
      %v604 = vxor.u32 %v572, 2147483648
      %v605 = vxor.u32 %v573, 2147483648
      %v606 = vxor.u32 %v574, 2147483648
      %v607 = vxor.u32 %v575, 2147483648
      %v608 = vxor.u32 %v576, 2147483648
      %v609 = vxor.u32 %v577, 2147483648
      %v610 = vxor.u32 %v578, 2147483648
      %v611 = vxor.u32 %v579, 2147483648
      %v612 = vxor.u32 %v580, 2147483648
      %v613 = vxor.u32 %v581, 2147483648
      %v614 = vmul.f32 %v582, 1.442695
      %v615 = vpow.pop %v614
      %v616 = vmul.f32 %v583, 1.442695
      %v617 = vpow.pop %v616
      %v618 = vmul.f32 %v584, 1.442695
      %v619 = vpow.pop %v618
      %v620 = vmul.f32 %v585, 1.442695
      %v621 = vpow.pop %v620
      %v622 = vmul.f32 %v586, 1.442695
      %v623 = vpow.pop %v622
      %v624 = vmul.f32 %v587, 1.442695
      %v625 = vpow.pop %v624
      %v626 = vmul.f32 %v588, 1.442695
      %v627 = vpow.pop %v626
      %v628 = vmul.f32 %v589, 1.442695
      %v629 = vpow.pop %v628
      %v630 = vmul.f32 %v590, 1.442695
      %v631 = vpow.pop %v630
      %v632 = vmul.f32 %v591, 1.442695
      %v633 = vpow.pop %v632
      %v634 = vmul.f32 %v592, 1.442695
      %v635 = vpow.pop %v634
      %v636 = vmul.f32 %v593, 1.442695
      %v637 = vpow.pop %v636
      %v638 = vmul.f32 %v594, 1.442695
      %v639 = vpow.pop %v638
      %v640 = vmul.f32 %v595, 1.442695
      %v641 = vpow.pop %v640
      %v642 = vmul.f32 %v596, 1.442695
      %v643 = vpow.pop %v642
      %v644 = vmul.f32 %v597, 1.442695
      %v645 = vpow.pop %v644
      %v646 = vmul.f32 %v598, 1.442695
      %v647 = vpow.pop %v646
      %v648 = vmul.f32 %v599, 1.442695
      %v649 = vpow.pop %v648
      %v650 = vmul.f32 %v600, 1.442695
      %v651 = vpow.pop %v650
      %v652 = vmul.f32 %v601, 1.442695
      %v653 = vpow.pop %v652
      %v654 = vmul.f32 %v602, 1.442695
      %v655 = vpow.pop %v654
      %v656 = vmul.f32 %v603, 1.442695
      %v657 = vpow.pop %v656
      %v658 = vmul.f32 %v604, 1.442695
      %v659 = vpow.pop %v658
      %v660 = vmul.f32 %v605, 1.442695
      %v661 = vpow.pop %v660
      %v662 = vmul.f32 %v606, 1.442695
      %v663 = vpow.pop %v662
      %v664 = vmul.f32 %v607, 1.442695
      %v665 = vpow.pop %v664
      %v666 = vmul.f32 %v608, 1.442695
      %v667 = vpow.pop %v666
      %v668 = vmul.f32 %v609, 1.442695
      %v669 = vpow.pop %v668
      %v670 = vmul.f32 %v610, 1.442695
      %v671 = vpow.pop %v670
      %v672 = vmul.f32 %v611, 1.442695
      %v673 = vpow.pop %v672
      %v674 = vmul.f32 %v612, 1.442695
      %v675 = vpow.pop %v674
      %v676 = vmul.f32 %v613, 1.442695
      %v677 = vpow.pop %v676
      %v678 = vadd.f32 %v615, 1.0
      %v679 = vadd.f32 %v617, 1.0
      %v680 = vadd.f32 %v619, 1.0
      %v681 = vadd.f32 %v621, 1.0
      %v682 = vadd.f32 %v623, 1.0
      %v683 = vadd.f32 %v625, 1.0
      %v684 = vadd.f32 %v627, 1.0
      %v685 = vadd.f32 %v629, 1.0
      %v686 = vadd.f32 %v631, 1.0
      %v687 = vadd.f32 %v633, 1.0
      %v688 = vadd.f32 %v635, 1.0
      %v689 = vadd.f32 %v637, 1.0
      %v690 = vadd.f32 %v639, 1.0
      %v691 = vadd.f32 %v641, 1.0
      %v692 = vadd.f32 %v643, 1.0
      %v693 = vadd.f32 %v645, 1.0
      %v694 = vadd.f32 %v647, 1.0
      %v695 = vadd.f32 %v649, 1.0
      %v696 = vadd.f32 %v651, 1.0
      %v697 = vadd.f32 %v653, 1.0
      %v698 = vadd.f32 %v655, 1.0
      %v699 = vadd.f32 %v657, 1.0
      %v700 = vadd.f32 %v659, 1.0
      %v701 = vadd.f32 %v661, 1.0
      %v702 = vadd.f32 %v663, 1.0
      %v703 = vadd.f32 %v665, 1.0
      %v704 = vadd.f32 %v667, 1.0
      %v705 = vadd.f32 %v669, 1.0
      %v706 = vadd.f32 %v671, 1.0
      %v707 = vadd.f32 %v673, 1.0
      %v708 = vadd.f32 %v675, 1.0
      %v709 = vadd.f32 %v677, 1.0
      %v710 = vrcp.pop %v678
      %v711 = vmul.f32 %v678, %v710
      %v712 = vsub.f32 1.0, %v711
      %v713 = vmul.f32 %v710, %v712
      %v714 = vadd.f32 %v710, %v713
      %vm715 = vweird.f32 %v678
      %vm716 = vweird.f32 %v710
      %vm717 = vmor %vm715, %vm716
      %v718 = vsel %vm717, %v710, %v714
      %v719 = vand.u32 2147483647, %v678
      %vm720 = vcmp.eq.f32.partialorder %v719, 8.507059e+37
      %v721 = vand.u32 %v678, 2147483648
      %v722 = vor.u32 1.1754944e-38, %v721
      %v723 = vsel %vm720, %v722, %v718
      %v724 = vmul.f32 1.0, %v723
      %v725 = vrcp.pop %v679
      %v726 = vmul.f32 %v679, %v725
      %v727 = vsub.f32 1.0, %v726
      %v728 = vmul.f32 %v725, %v727
      %v729 = vadd.f32 %v725, %v728
      %vm730 = vweird.f32 %v679
      %vm731 = vweird.f32 %v725
      %vm732 = vmor %vm730, %vm731
      %v733 = vsel %vm732, %v725, %v729
      %v734 = vand.u32 2147483647, %v679
      %vm735 = vcmp.eq.f32.partialorder %v734, 8.507059e+37
      %v736 = vand.u32 %v679, 2147483648
      %v737 = vor.u32 1.1754944e-38, %v736
      %v738 = vsel %vm735, %v737, %v733
      %v739 = vmul.f32 1.0, %v738
      %v740 = vrcp.pop %v680
      %v741 = vmul.f32 %v680, %v740
      %v742 = vsub.f32 1.0, %v741
      %v743 = vmul.f32 %v740, %v742
      %v744 = vadd.f32 %v740, %v743
      %vm745 = vweird.f32 %v680
      %vm746 = vweird.f32 %v740
      %vm747 = vmor %vm745, %vm746
      %v748 = vsel %vm747, %v740, %v744
      %v749 = vand.u32 2147483647, %v680
      %vm750 = vcmp.eq.f32.partialorder %v749, 8.507059e+37
      %v751 = vand.u32 %v680, 2147483648
      %v752 = vor.u32 1.1754944e-38, %v751
      %v753 = vsel %vm750, %v752, %v748
      %v754 = vmul.f32 1.0, %v753
      %v755 = vrcp.pop %v681
      %v756 = vmul.f32 %v681, %v755
      %v757 = vsub.f32 1.0, %v756
      %v758 = vmul.f32 %v755, %v757
      %v759 = vadd.f32 %v755, %v758
      %vm760 = vweird.f32 %v681
      %vm761 = vweird.f32 %v755
      %vm762 = vmor %vm760, %vm761
      %v763 = vsel %vm762, %v755, %v759
      %v764 = vand.u32 2147483647, %v681
      %vm765 = vcmp.eq.f32.partialorder %v764, 8.507059e+37
      %v766 = vand.u32 %v681, 2147483648
      %v767 = vor.u32 1.1754944e-38, %v766
      %v768 = vsel %vm765, %v767, %v763
      %v769 = vmul.f32 1.0, %v768
      %v770 = vrcp.pop %v682
      %v771 = vmul.f32 %v682, %v770
      %v772 = vsub.f32 1.0, %v771
      %v773 = vmul.f32 %v770, %v772
      %v774 = vadd.f32 %v770, %v773
      %vm775 = vweird.f32 %v682
      %vm776 = vweird.f32 %v770
      %vm777 = vmor %vm775, %vm776
      %v778 = vsel %vm777, %v770, %v774
      %v779 = vand.u32 2147483647, %v682
      %vm780 = vcmp.eq.f32.partialorder %v779, 8.507059e+37
      %v781 = vand.u32 %v682, 2147483648
      %v782 = vor.u32 1.1754944e-38, %v781
      %v783 = vsel %vm780, %v782, %v778
      %v784 = vmul.f32 1.0, %v783
      %v785 = vrcp.pop %v683
      %v786 = vmul.f32 %v683, %v785
      %v787 = vsub.f32 1.0, %v786
      %v788 = vmul.f32 %v785, %v787
      %v789 = vadd.f32 %v785, %v788
      %vm790 = vweird.f32 %v683
      %vm791 = vweird.f32 %v785
      %vm792 = vmor %vm790, %vm791
      %v793 = vsel %vm792, %v785, %v789
      %v794 = vand.u32 2147483647, %v683
      %vm795 = vcmp.eq.f32.partialorder %v794, 8.507059e+37
      %v796 = vand.u32 %v683, 2147483648
      %v797 = vor.u32 1.1754944e-38, %v796
      %v798 = vsel %vm795, %v797, %v793
      %v799 = vmul.f32 1.0, %v798
      %v800 = vrcp.pop %v684
      %v801 = vmul.f32 %v684, %v800
      %v802 = vsub.f32 1.0, %v801
      %v803 = vmul.f32 %v800, %v802
      %v804 = vadd.f32 %v800, %v803
      %vm805 = vweird.f32 %v684
      %vm806 = vweird.f32 %v800
      %vm807 = vmor %vm805, %vm806
      %v808 = vsel %vm807, %v800, %v804
      %v809 = vand.u32 2147483647, %v684
      %vm810 = vcmp.eq.f32.partialorder %v809, 8.507059e+37
      %v811 = vand.u32 %v684, 2147483648
      %v812 = vor.u32 1.1754944e-38, %v811
      %v813 = vsel %vm810, %v812, %v808
      %v814 = vmul.f32 1.0, %v813
      %v815 = vrcp.pop %v685
      %v816 = vmul.f32 %v685, %v815
      %v817 = vsub.f32 1.0, %v816
      %v818 = vmul.f32 %v815, %v817
      %v819 = vadd.f32 %v815, %v818
      %vm820 = vweird.f32 %v685
      %vm821 = vweird.f32 %v815
      %vm822 = vmor %vm820, %vm821
      %v823 = vsel %vm822, %v815, %v819
      %v824 = vand.u32 2147483647, %v685
      %vm825 = vcmp.eq.f32.partialorder %v824, 8.507059e+37
      %v826 = vand.u32 %v685, 2147483648
      %v827 = vor.u32 1.1754944e-38, %v826
      %v828 = vsel %vm825, %v827, %v823
      %v829 = vmul.f32 1.0, %v828
      %v830 = vrcp.pop %v686
      %v831 = vmul.f32 %v686, %v830
      %v832 = vsub.f32 1.0, %v831
      %v833 = vmul.f32 %v830, %v832
      %v834 = vadd.f32 %v830, %v833
      %vm835 = vweird.f32 %v686
      %vm836 = vweird.f32 %v830
      %vm837 = vmor %vm835, %vm836
      %v838 = vsel %vm837, %v830, %v834
      %v839 = vand.u32 2147483647, %v686
      %vm840 = vcmp.eq.f32.partialorder %v839, 8.507059e+37
      %v841 = vand.u32 %v686, 2147483648
      %v842 = vor.u32 1.1754944e-38, %v841
      %v843 = vsel %vm840, %v842, %v838
      %v844 = vmul.f32 1.0, %v843
      %v845 = vrcp.pop %v687
      %v846 = vmul.f32 %v687, %v845
      %v847 = vsub.f32 1.0, %v846
      %v848 = vmul.f32 %v845, %v847
      %v849 = vadd.f32 %v845, %v848
      %vm850 = vweird.f32 %v687
      %vm851 = vweird.f32 %v845
      %vm852 = vmor %vm850, %vm851
      %v853 = vsel %vm852, %v845, %v849
      %v854 = vand.u32 2147483647, %v687
      %vm855 = vcmp.eq.f32.partialorder %v854, 8.507059e+37
      %v856 = vand.u32 %v687, 2147483648
      %v857 = vor.u32 1.1754944e-38, %v856
      %v858 = vsel %vm855, %v857, %v853
      %v859 = vmul.f32 1.0, %v858
      %v860 = vrcp.pop %v688
      %v861 = vmul.f32 %v688, %v860
      %v862 = vsub.f32 1.0, %v861
      %v863 = vmul.f32 %v860, %v862
      %v864 = vadd.f32 %v860, %v863
      %vm865 = vweird.f32 %v688
      %vm866 = vweird.f32 %v860
      %vm867 = vmor %vm865, %vm866
      %v868 = vsel %vm867, %v860, %v864
      %v869 = vand.u32 2147483647, %v688
      %vm870 = vcmp.eq.f32.partialorder %v869, 8.507059e+37
      %v871 = vand.u32 %v688, 2147483648
      %v872 = vor.u32 1.1754944e-38, %v871
      %v873 = vsel %vm870, %v872, %v868
      %v874 = vmul.f32 1.0, %v873
      %v875 = vrcp.pop %v689
      %v876 = vmul.f32 %v689, %v875
      %v877 = vsub.f32 1.0, %v876
      %v878 = vmul.f32 %v875, %v877
      %v879 = vadd.f32 %v875, %v878
      %vm880 = vweird.f32 %v689
      %vm881 = vweird.f32 %v875
      %vm882 = vmor %vm880, %vm881
      %v883 = vsel %vm882, %v875, %v879
      %v884 = vand.u32 2147483647, %v689
      %vm885 = vcmp.eq.f32.partialorder %v884, 8.507059e+37
      %v886 = vand.u32 %v689, 2147483648
      %v887 = vor.u32 1.1754944e-38, %v886
      %v888 = vsel %vm885, %v887, %v883
      %v889 = vmul.f32 1.0, %v888
      %v890 = vrcp.pop %v690
      %v891 = vmul.f32 %v690, %v890
      %v892 = vsub.f32 1.0, %v891
      %v893 = vmul.f32 %v890, %v892
      %v894 = vadd.f32 %v890, %v893
      %vm895 = vweird.f32 %v690
      %vm896 = vweird.f32 %v890
      %vm897 = vmor %vm895, %vm896
      %v898 = vsel %vm897, %v890, %v894
      %v899 = vand.u32 2147483647, %v690
      %vm900 = vcmp.eq.f32.partialorder %v899, 8.507059e+37
      %v901 = vand.u32 %v690, 2147483648
      %v902 = vor.u32 1.1754944e-38, %v901
      %v903 = vsel %vm900, %v902, %v898
      %v904 = vmul.f32 1.0, %v903
      %v905 = vrcp.pop %v691
      %v906 = vmul.f32 %v691, %v905
      %v907 = vsub.f32 1.0, %v906
      %v908 = vmul.f32 %v905, %v907
      %v909 = vadd.f32 %v905, %v908
      %vm910 = vweird.f32 %v691
      %vm911 = vweird.f32 %v905
      %vm912 = vmor %vm910, %vm911
      %v913 = vsel %vm912, %v905, %v909
      %v914 = vand.u32 2147483647, %v691
      %vm915 = vcmp.eq.f32.partialorder %v914, 8.507059e+37
      %v916 = vand.u32 %v691, 2147483648
      %v917 = vor.u32 1.1754944e-38, %v916
      %v918 = vsel %vm915, %v917, %v913
      %v919 = vmul.f32 1.0, %v918
      %v920 = vrcp.pop %v692
      %v921 = vmul.f32 %v692, %v920
      %v922 = vsub.f32 1.0, %v921
      %v923 = vmul.f32 %v920, %v922
      %v924 = vadd.f32 %v920, %v923
      %vm925 = vweird.f32 %v692
      %vm926 = vweird.f32 %v920
      %vm927 = vmor %vm925, %vm926
      %v928 = vsel %vm927, %v920, %v924
      %v929 = vand.u32 2147483647, %v692
      %vm930 = vcmp.eq.f32.partialorder %v929, 8.507059e+37
      %v931 = vand.u32 %v692, 2147483648
      %v932 = vor.u32 1.1754944e-38, %v931
      %v933 = vsel %vm930, %v932, %v928
      %v934 = vmul.f32 1.0, %v933
      %v935 = vrcp.pop %v693
      %v936 = vmul.f32 %v693, %v935
      %v937 = vsub.f32 1.0, %v936
      %v938 = vmul.f32 %v935, %v937
      %v939 = vadd.f32 %v935, %v938
      %vm940 = vweird.f32 %v693
      %vm941 = vweird.f32 %v935
      %vm942 = vmor %vm940, %vm941
      %v943 = vsel %vm942, %v935, %v939
      %v944 = vand.u32 2147483647, %v693
      %vm945 = vcmp.eq.f32.partialorder %v944, 8.507059e+37
      %v946 = vand.u32 %v693, 2147483648
      %v947 = vor.u32 1.1754944e-38, %v946
      %v948 = vsel %vm945, %v947, %v943
      %v949 = vmul.f32 1.0, %v948
      %v950 = vrcp.pop %v694
      %v951 = vmul.f32 %v694, %v950
      %v952 = vsub.f32 1.0, %v951
      %v953 = vmul.f32 %v950, %v952
      %v954 = vadd.f32 %v950, %v953
      %vm955 = vweird.f32 %v694
      %vm956 = vweird.f32 %v950
      %vm957 = vmor %vm955, %vm956
      %v958 = vsel %vm957, %v950, %v954
      %v959 = vand.u32 2147483647, %v694
      %vm960 = vcmp.eq.f32.partialorder %v959, 8.507059e+37
      %v961 = vand.u32 %v694, 2147483648
      %v962 = vor.u32 1.1754944e-38, %v961
      %v963 = vsel %vm960, %v962, %v958
      %v964 = vmul.f32 1.0, %v963
      %v965 = vrcp.pop %v695
      %v966 = vmul.f32 %v695, %v965
      %v967 = vsub.f32 1.0, %v966
      %v968 = vmul.f32 %v965, %v967
      %v969 = vadd.f32 %v965, %v968
      %vm970 = vweird.f32 %v695
      %vm971 = vweird.f32 %v965
      %vm972 = vmor %vm970, %vm971
      %v973 = vsel %vm972, %v965, %v969
      %v974 = vand.u32 2147483647, %v695
      %vm975 = vcmp.eq.f32.partialorder %v974, 8.507059e+37
      %v976 = vand.u32 %v695, 2147483648
      %v977 = vor.u32 1.1754944e-38, %v976
      %v978 = vsel %vm975, %v977, %v973
      %v979 = vmul.f32 1.0, %v978
      %v980 = vrcp.pop %v696
      %v981 = vmul.f32 %v696, %v980
      %v982 = vsub.f32 1.0, %v981
      %v983 = vmul.f32 %v980, %v982
      %v984 = vadd.f32 %v980, %v983
      %vm985 = vweird.f32 %v696
      %vm986 = vweird.f32 %v980
      %vm987 = vmor %vm985, %vm986
      %v988 = vsel %vm987, %v980, %v984
      %v989 = vand.u32 2147483647, %v696
      %vm990 = vcmp.eq.f32.partialorder %v989, 8.507059e+37
      %v991 = vand.u32 %v696, 2147483648
      %v992 = vor.u32 1.1754944e-38, %v991
      %v993 = vsel %vm990, %v992, %v988
      %v994 = vmul.f32 1.0, %v993
      %v995 = vrcp.pop %v697
      %v996 = vmul.f32 %v697, %v995
      %v997 = vsub.f32 1.0, %v996
      %v998 = vmul.f32 %v995, %v997
      %v999 = vadd.f32 %v995, %v998
      %vm1000 = vweird.f32 %v697
      %vm1001 = vweird.f32 %v995
      %vm1002 = vmor %vm1000, %vm1001
      %v1003 = vsel %vm1002, %v995, %v999
      %v1004 = vand.u32 2147483647, %v697
      %vm1005 = vcmp.eq.f32.partialorder %v1004, 8.507059e+37
      %v1006 = vand.u32 %v697, 2147483648
      %v1007 = vor.u32 1.1754944e-38, %v1006
      %v1008 = vsel %vm1005, %v1007, %v1003
      %v1009 = vmul.f32 1.0, %v1008
      %v1010 = vrcp.pop %v698
      %v1011 = vmul.f32 %v698, %v1010
      %v1012 = vsub.f32 1.0, %v1011
      %v1013 = vmul.f32 %v1010, %v1012
      %v1014 = vadd.f32 %v1010, %v1013
      %vm1015 = vweird.f32 %v698
      %vm1016 = vweird.f32 %v1010
      %vm1017 = vmor %vm1015, %vm1016
      %v1018 = vsel %vm1017, %v1010, %v1014
      %v1019 = vand.u32 2147483647, %v698
      %vm1020 = vcmp.eq.f32.partialorder %v1019, 8.507059e+37
      %v1021 = vand.u32 %v698, 2147483648
      %v1022 = vor.u32 1.1754944e-38, %v1021
      %v1023 = vsel %vm1020, %v1022, %v1018
      %v1024 = vmul.f32 1.0, %v1023
      %v1025 = vrcp.pop %v699
      %v1026 = vmul.f32 %v699, %v1025
      %v1027 = vsub.f32 1.0, %v1026
      %v1028 = vmul.f32 %v1025, %v1027
      %v1029 = vadd.f32 %v1025, %v1028
      %vm1030 = vweird.f32 %v699
      %vm1031 = vweird.f32 %v1025
      %vm1032 = vmor %vm1030, %vm1031
      %v1033 = vsel %vm1032, %v1025, %v1029
      %v1034 = vand.u32 2147483647, %v699
      %vm1035 = vcmp.eq.f32.partialorder %v1034, 8.507059e+37
      %v1036 = vand.u32 %v699, 2147483648
      %v1037 = vor.u32 1.1754944e-38, %v1036
      %v1038 = vsel %vm1035, %v1037, %v1033
      %v1039 = vmul.f32 1.0, %v1038
      %v1040 = vrcp.pop %v700
      %v1041 = vmul.f32 %v700, %v1040
      %v1042 = vsub.f32 1.0, %v1041
      %v1043 = vmul.f32 %v1040, %v1042
      %v1044 = vadd.f32 %v1040, %v1043
      %vm1045 = vweird.f32 %v700
      %vm1046 = vweird.f32 %v1040
      %vm1047 = vmor %vm1045, %vm1046
      %v1048 = vsel %vm1047, %v1040, %v1044
      %v1049 = vand.u32 2147483647, %v700
      %vm1050 = vcmp.eq.f32.partialorder %v1049, 8.507059e+37
      %v1051 = vand.u32 %v700, 2147483648
      %v1052 = vor.u32 1.1754944e-38, %v1051
      %v1053 = vsel %vm1050, %v1052, %v1048
      %v1054 = vmul.f32 1.0, %v1053
      %v1055 = vrcp.pop %v701
      %v1056 = vmul.f32 %v701, %v1055
      %v1057 = vsub.f32 1.0, %v1056
      %v1058 = vmul.f32 %v1055, %v1057
      %v1059 = vadd.f32 %v1055, %v1058
      %vm1060 = vweird.f32 %v701
      %vm1061 = vweird.f32 %v1055
      %vm1062 = vmor %vm1060, %vm1061
      %v1063 = vsel %vm1062, %v1055, %v1059
      %v1064 = vand.u32 2147483647, %v701
      %vm1065 = vcmp.eq.f32.partialorder %v1064, 8.507059e+37
      %v1066 = vand.u32 %v701, 2147483648
      %v1067 = vor.u32 1.1754944e-38, %v1066
      %v1068 = vsel %vm1065, %v1067, %v1063
      %v1069 = vmul.f32 1.0, %v1068
      %v1070 = vrcp.pop %v702
      %v1071 = vmul.f32 %v702, %v1070
      %v1072 = vsub.f32 1.0, %v1071
      %v1073 = vmul.f32 %v1070, %v1072
      %v1074 = vadd.f32 %v1070, %v1073
      %vm1075 = vweird.f32 %v702
      %vm1076 = vweird.f32 %v1070
      %vm1077 = vmor %vm1075, %vm1076
      %v1078 = vsel %vm1077, %v1070, %v1074
      %v1079 = vand.u32 2147483647, %v702
      %vm1080 = vcmp.eq.f32.partialorder %v1079, 8.507059e+37
      %v1081 = vand.u32 %v702, 2147483648
      %v1082 = vor.u32 1.1754944e-38, %v1081
      %v1083 = vsel %vm1080, %v1082, %v1078
      %v1084 = vmul.f32 1.0, %v1083
      %v1085 = vrcp.pop %v703
      %v1086 = vmul.f32 %v703, %v1085
      %v1087 = vsub.f32 1.0, %v1086
      %v1088 = vmul.f32 %v1085, %v1087
      %v1089 = vadd.f32 %v1085, %v1088
      %vm1090 = vweird.f32 %v703
      %vm1091 = vweird.f32 %v1085
      %vm1092 = vmor %vm1090, %vm1091
      %v1093 = vsel %vm1092, %v1085, %v1089
      %v1094 = vand.u32 2147483647, %v703
      %vm1095 = vcmp.eq.f32.partialorder %v1094, 8.507059e+37
      %v1096 = vand.u32 %v703, 2147483648
      %v1097 = vor.u32 1.1754944e-38, %v1096
      %v1098 = vsel %vm1095, %v1097, %v1093
      %v1099 = vmul.f32 1.0, %v1098
      %v1100 = vrcp.pop %v704
      %v1101 = vmul.f32 %v704, %v1100
      %v1102 = vsub.f32 1.0, %v1101
      %v1103 = vmul.f32 %v1100, %v1102
      %v1104 = vadd.f32 %v1100, %v1103
      %vm1105 = vweird.f32 %v704
      %vm1106 = vweird.f32 %v1100
      %vm1107 = vmor %vm1105, %vm1106
      %v1108 = vsel %vm1107, %v1100, %v1104
      %v1109 = vand.u32 2147483647, %v704
      %vm1110 = vcmp.eq.f32.partialorder %v1109, 8.507059e+37
      %v1111 = vand.u32 %v704, 2147483648
      %v1112 = vor.u32 1.1754944e-38, %v1111
      %v1113 = vsel %vm1110, %v1112, %v1108
      %v1114 = vmul.f32 1.0, %v1113
      %v1115 = vrcp.pop %v705
      %v1116 = vmul.f32 %v705, %v1115
      %v1117 = vsub.f32 1.0, %v1116
      %v1118 = vmul.f32 %v1115, %v1117
      %v1119 = vadd.f32 %v1115, %v1118
      %vm1120 = vweird.f32 %v705
      %vm1121 = vweird.f32 %v1115
      %vm1122 = vmor %vm1120, %vm1121
      %v1123 = vsel %vm1122, %v1115, %v1119
      %v1124 = vand.u32 2147483647, %v705
      %vm1125 = vcmp.eq.f32.partialorder %v1124, 8.507059e+37
      %v1126 = vand.u32 %v705, 2147483648
      %v1127 = vor.u32 1.1754944e-38, %v1126
      %v1128 = vsel %vm1125, %v1127, %v1123
      %v1129 = vmul.f32 1.0, %v1128
      %v1130 = vrcp.pop %v706
      %v1131 = vmul.f32 %v706, %v1130
      %v1132 = vsub.f32 1.0, %v1131
      %v1133 = vmul.f32 %v1130, %v1132
      %v1134 = vadd.f32 %v1130, %v1133
      %vm1135 = vweird.f32 %v706
      %vm1136 = vweird.f32 %v1130
      %vm1137 = vmor %vm1135, %vm1136
      %v1138 = vsel %vm1137, %v1130, %v1134
      %v1139 = vand.u32 2147483647, %v706
      %vm1140 = vcmp.eq.f32.partialorder %v1139, 8.507059e+37
      %v1141 = vand.u32 %v706, 2147483648
      %v1142 = vor.u32 1.1754944e-38, %v1141
      %v1143 = vsel %vm1140, %v1142, %v1138
      %v1144 = vmul.f32 1.0, %v1143
      %v1145 = vrcp.pop %v707
      %v1146 = vmul.f32 %v707, %v1145
      %v1147 = vsub.f32 1.0, %v1146
      %v1148 = vmul.f32 %v1145, %v1147
      %v1149 = vadd.f32 %v1145, %v1148
      %vm1150 = vweird.f32 %v707
      %vm1151 = vweird.f32 %v1145
      %vm1152 = vmor %vm1150, %vm1151
      %v1153 = vsel %vm1152, %v1145, %v1149
      %v1154 = vand.u32 2147483647, %v707
      %vm1155 = vcmp.eq.f32.partialorder %v1154, 8.507059e+37
      %v1156 = vand.u32 %v707, 2147483648
      %v1157 = vor.u32 1.1754944e-38, %v1156
      %v1158 = vsel %vm1155, %v1157, %v1153
      %v1159 = vmul.f32 1.0, %v1158
      %v1160 = vrcp.pop %v708
      %v1161 = vmul.f32 %v708, %v1160
      %v1162 = vsub.f32 1.0, %v1161
      %v1163 = vmul.f32 %v1160, %v1162
      %v1164 = vadd.f32 %v1160, %v1163
      %vm1165 = vweird.f32 %v708
      %vm1166 = vweird.f32 %v1160
      %vm1167 = vmor %vm1165, %vm1166
      %v1168 = vsel %vm1167, %v1160, %v1164
      %v1169 = vand.u32 2147483647, %v708
      %vm1170 = vcmp.eq.f32.partialorder %v1169, 8.507059e+37
      %v1171 = vand.u32 %v708, 2147483648
      %v1172 = vor.u32 1.1754944e-38, %v1171
      %v1173 = vsel %vm1170, %v1172, %v1168
      %v1174 = vmul.f32 1.0, %v1173
      %v1175 = vrcp.pop %v709
      %v1176 = vmul.f32 %v709, %v1175
      %v1177 = vsub.f32 1.0, %v1176
      %v1178 = vmul.f32 %v1175, %v1177
      %v1179 = vadd.f32 %v1175, %v1178
      %vm1180 = vweird.f32 %v709
      %vm1181 = vweird.f32 %v1175
      %vm1182 = vmor %vm1180, %vm1181
      %v1183 = vsel %vm1182, %v1175, %v1179
      %v1184 = vand.u32 2147483647, %v709
      %vm1185 = vcmp.eq.f32.partialorder %v1184, 8.507059e+37
      %v1186 = vand.u32 %v709, 2147483648
      %v1187 = vor.u32 1.1754944e-38, %v1186
      %v1188 = vsel %vm1185, %v1187, %v1183
      %v1189 = vmul.f32 1.0, %v1188
      %v1190 = vmul.f32 %v550, %v724
      %v1191 = vmul.f32 %v551, %v739
      %v1192 = vmul.f32 %v552, %v754
      %v1193 = vmul.f32 %v553, %v769
      %v1194 = vmul.f32 %v554, %v784
      %v1195 = vmul.f32 %v555, %v799
      %v1196 = vmul.f32 %v556, %v814
      %v1197 = vmul.f32 %v557, %v829
      %v1198 = vmul.f32 %v558, %v844
      %v1199 = vmul.f32 %v559, %v859
      %v1200 = vmul.f32 %v560, %v874
      %v1201 = vmul.f32 %v561, %v889
      %v1202 = vmul.f32 %v562, %v904
      %v1203 = vmul.f32 %v563, %v919
      %v1204 = vmul.f32 %v564, %v934
      %v1205 = vmul.f32 %v565, %v949
      %v1206 = vmul.f32 %v566, %v964
      %v1207 = vmul.f32 %v567, %v979
      %v1208 = vmul.f32 %v568, %v994
      %v1209 = vmul.f32 %v569, %v1009
      %v1210 = vmul.f32 %v570, %v1024
      %v1211 = vmul.f32 %v571, %v1039
      %v1212 = vmul.f32 %v572, %v1054
      %v1213 = vmul.f32 %v573, %v1069
      %v1214 = vmul.f32 %v574, %v1084
      %v1215 = vmul.f32 %v575, %v1099
      %v1216 = vmul.f32 %v576, %v1114
      %v1217 = vmul.f32 %v577, %v1129
      %v1218 = vmul.f32 %v578, %v1144
      %v1219 = vmul.f32 %v579, %v1159
      %v1220 = vmul.f32 %v580, %v1174
      %v1221 = vmul.f32 %v581, %v1189
      %v1222 = vpack.c.bf16 %v1190, %v1190
      %v1223 = vpack.c.bf16 %v1191, %v1191
      %v1224 = vpack.c.bf16 %v1192, %v1192
      %v1225 = vpack.c.bf16 %v1193, %v1193
      %v1226 = vpack.c.bf16 %v1194, %v1194
      %v1227 = vpack.c.bf16 %v1195, %v1195
      %v1228 = vpack.c.bf16 %v1196, %v1196
      %v1229 = vpack.c.bf16 %v1197, %v1197
      %v1230 = vpack.c.bf16 %v1198, %v1198
      %v1231 = vpack.c.bf16 %v1199, %v1199
      %v1232 = vpack.c.bf16 %v1200, %v1200
      %v1233 = vpack.c.bf16 %v1201, %v1201
      %v1234 = vpack.c.bf16 %v1202, %v1202
      %v1235 = vpack.c.bf16 %v1203, %v1203
      %v1236 = vpack.c.bf16 %v1204, %v1204
      %v1237 = vpack.c.bf16 %v1205, %v1205
      %v1238 = vpack.c.bf16 %v1206, %v1206
      %v1239 = vpack.c.bf16 %v1207, %v1207
      %v1240 = vpack.c.bf16 %v1208, %v1208
      %v1241 = vpack.c.bf16 %v1209, %v1209
      %v1242 = vpack.c.bf16 %v1210, %v1210
      %v1243 = vpack.c.bf16 %v1211, %v1211
      %v1244 = vpack.c.bf16 %v1212, %v1212
      %v1245 = vpack.c.bf16 %v1213, %v1213
      %v1246 = vpack.c.bf16 %v1214, %v1214
      %v1247 = vpack.c.bf16 %v1215, %v1215
      %v1248 = vpack.c.bf16 %v1216, %v1216
      %v1249 = vpack.c.bf16 %v1217, %v1217
      %v1250 = vpack.c.bf16 %v1218, %v1218
      %v1251 = vpack.c.bf16 %v1219, %v1219
      %v1252 = vpack.c.bf16 %v1220, %v1220
      %v1253 = vpack.c.bf16 %v1221, %v1221
      %vm1254 = vcmask 257024
      %1255 = vst.msk [vmem:[%s235] sm:$0xf] %vm1254, %v1222
      %1256 = vst.msk [vmem:[%s235 + $0x4] sm:$0xf] %vm1254, %v1223
      %1257 = vst.msk [vmem:[%s235 + $0x8] sm:$0xf] %vm1254, %v1224
      %1258 = vst.msk [vmem:[%s235 + $0xc] sm:$0xf] %vm1254, %v1225
      %1259 = vst.msk [vmem:[%s235 + $0x10] sm:$0xf] %vm1254, %v1226
      %1260 = vst.msk [vmem:[%s235 + $0x14] sm:$0xf] %vm1254, %v1227
      %1261 = vst.msk [vmem:[%s235 + $0x18] sm:$0xf] %vm1254, %v1228
      %1262 = vst.msk [vmem:[%s235 + $0x1c] sm:$0xf] %vm1254, %v1229
      %1263 = vst.msk [vmem:[%s235 + $0x20] sm:$0xf] %vm1254, %v1230
      %1264 = vst.msk [vmem:[%s235 + $0x24] sm:$0xf] %vm1254, %v1231
      %1265 = vst.msk [vmem:[%s235 + $0x28] sm:$0xf] %vm1254, %v1232
      %1266 = vst.msk [vmem:[%s235 + $0x2c] sm:$0xf] %vm1254, %v1233
      %1267 = vst.msk [vmem:[%s235 + $0x30] sm:$0xf] %vm1254, %v1234
      %1268 = vst.msk [vmem:[%s235 + $0x34] sm:$0xf] %vm1254, %v1235
      %1269 = vst.msk [vmem:[%s235 + $0x38] sm:$0xf] %vm1254, %v1236
      %1270 = vst.msk [vmem:[%s235 + $0x3c] sm:$0xf] %vm1254, %v1237
      %1271 = vst.msk [vmem:[%s235 + $0x40] sm:$0xf] %vm1254, %v1238
      %1272 = vst.msk [vmem:[%s235 + $0x44] sm:$0xf] %vm1254, %v1239
      %1273 = vst.msk [vmem:[%s235 + $0x48] sm:$0xf] %vm1254, %v1240
      %1274 = vst.msk [vmem:[%s235 + $0x4c] sm:$0xf] %vm1254, %v1241
      %1275 = vst.msk [vmem:[%s235 + $0x50] sm:$0xf] %vm1254, %v1242
      %1276 = vst.msk [vmem:[%s235 + $0x54] sm:$0xf] %vm1254, %v1243
      %1277 = vst.msk [vmem:[%s235 + $0x58] sm:$0xf] %vm1254, %v1244
      %1278 = vst.msk [vmem:[%s235 + $0x5c] sm:$0xf] %vm1254, %v1245
      %1279 = vst.msk [vmem:[%s235 + $0x60] sm:$0xf] %vm1254, %v1246
      %1280 = vst.msk [vmem:[%s235 + $0x64] sm:$0xf] %vm1254, %v1247
      %1281 = vst.msk [vmem:[%s235 + $0x68] sm:$0xf] %vm1254, %v1248
      %1282 = vst.msk [vmem:[%s235 + $0x6c] sm:$0xf] %vm1254, %v1249
      %1283 = vst.msk [vmem:[%s235 + $0x70] sm:$0xf] %vm1254, %v1250
      %1284 = vst.msk [vmem:[%s235 + $0x74] sm:$0xf] %vm1254, %v1251
      %1285 = vst.msk [vmem:[%s235 + $0x78] sm:$0xf] %vm1254, %v1252
      %1286 = vst.msk [vmem:[%s235 + $0x7c] sm:$0xf] %vm1254, %v1253
      %s1287 = smul.u32 32, %s20
      %p1288 = scmp.lt.s32.totalorder %s19, 1
      %s1289 = scalar_select %p1288, %s19, 1
      %p1290 = scmp.lt.s32.totalorder %s1287, 31
      %s1291 = scalar_select %p1290, %s1287, 31
      %s1292 = smul.addr %s1289, 32
      %s1293 = sadd.s32 %s1291, %s1292
      %s1294 = smul.addr %s1293, 4
      %s1295 = scalar_lea.vmem %s4, %s1294
      // Predicated region
      $region37: #{tpu_custom_call.1} parent=35 // pred_check
        %p1296 = pneg %p138
      $region38: #{tpu_custom_call.1} parent=35 // pred_check_branch
        %1298 = sbr.rel (%p1296) target = $region40
      $region39: #{tpu_custom_call.1} parent=35 // pred_region
        %s1299 = smul.u32 32, %s20
      $region40: #{tpu_custom_call.1} parent=35 // pred_fallthru
        _
    $region36: #{tpu_custom_call.1} parent=5 // pred_fallthru
      _
    %p1300 = scmp.le.s32.totalorder 2, %s10
    // Predicated region
    $region41: #{tpu_custom_call.1} parent=5 // pred_check
      %p1301 = pneg %p1300
    $region42: #{tpu_custom_call.1} parent=5 // pred_check_branch
      %1303 = sbr.rel (%p1301) target = $region44
    $region43: #{tpu_custom_call.1} parent=5 // pred_region
      %s1304 = ssub.s32 %s10, 2
      // Predicated region
      $region45: #{tpu_custom_call.1} parent=43 // pred_check
        %p1305 = pneg %p144
      $region46: #{tpu_custom_call.1} parent=43 // pred_check_branch
        %1307 = sbr.rel (%p1305) target = $region48
      $region47: #{tpu_custom_call.1} parent=43 // pred_region
        %s1308 = smul.u32 32, %s22
        %p1309 = scmp.lt.s32.totalorder %s21, 1
        %s1310 = scalar_select %p1309, %s21, 1
        %p1311 = scmp.lt.s32.totalorder %s1308, 31
        %s1312 = scalar_select %p1311, %s1308, 31
        %s1313 = smul.addr %s1310, 32
        %s1314 = sadd.s32 %s1312, %s1313
        %s1315 = smul.addr %s1314, 4
        %s1316 = scalar_lea.vmem %s4, %s1315
      $region48: #{tpu_custom_call.1} parent=43 // pred_fallthru
        _
    $region44: #{tpu_custom_call.1} parent=5 // pred_fallthru
      _
  $region6: #{tpu_custom_call.1} parent=0 // loop_footer
    %s14 = sadd.s32 1, %s10
  $region7: #{tpu_custom_call.1} parent=0 // loop_footer_branch
    %9 = sbr.rel target = $region3
  $region8: #{tpu_custom_call.1} parent=0 // loop_exit
    _

</llo_original>
